<compile_context>
chip_gen: v6e
topology: v6e:2x2x1
jax: 0.10.0
libtpu: 0.0.40
codegen_flags: <defaults>
</compile_context>

<pallas_src>
import functools

import jax
import jax.numpy as jnp
from jax.experimental import pallas as pl
from jax.experimental.pallas import tpu as pltpu

C = 4                    # number of classes (fixed by the module: 4 reciprocal counts)
MAX_TILE_LANES = 32768   # lanes per grid step (per segment); 8 segments => 256K pixels/step


def _wce_kernel(logits_ref, tgt_ref, out_ref, *, hw_s, tile_p, n_split):
    """Processes one (C*n_split, tile_p) logits tile of one image.

    logits_ref: (C*n_split, tile_p) float -- row c*n_split + s = class c, pixel segment s
    tgt_ref:    (n_split,   tile_p) int32 -- class index per pixel
    out_ref:    (2*C*n_split, 1)    f32   -- rows [0, C*n_split): per-(class, segment) NLL sums
                                             rows [C*n_split, 2*C*n_split): pixel counts
    """
    i = pl.program_id(1)
    rows = C * n_split

    x = logits_ref[...].astype(jnp.float32)            # (rows, T)
    t = tgt_ref[...]                                   # (n_split, T)

    if hw_s % tile_p != 0:
        # Ragged last tile: mask out-of-image lanes (padded block data is garbage).
        lane = jax.lax.broadcasted_iota(jnp.int32, (1, tile_p), 1)
        valid = (i * tile_p + lane) < hw_s             # (1, T), broadcasts over rows
        x = jnp.where(valid, x, 0.0)
    else:
        valid = None

    # Per-class row groups: aligned 8-sublane slices when n_split == 8 (fast path).
    xs = [x[c * n_split:(c + 1) * n_split, :] for c in range(C)]

    # Numerically stable log-sum-exp over the class axis; (n_split, T) per-pixel values.
    m = jnp.maximum(jnp.maximum(xs[0], xs[1]), jnp.maximum(xs[2], xs[3]))
    es = [jnp.exp(xc - m) for xc in xs]
    s = (es[0] + es[1]) + (es[2] + es[3])
    lse = m + jnp.log(s)                               # (n_split, T)

    nll_parts = []
    cnt_parts = []
    for cls in range(C):
        oh = t == cls                                  # (n_split, T) bool
        if valid is not None:
            oh = jnp.logical_and(oh, valid)
        ohf = oh.astype(jnp.float32)
        # Lane-reduce THIS tile immediately (no full-width accumulator RMW).
        nll_parts.append(jnp.sum(ohf * (lse - xs[cls]), axis=1, keepdims=True))
        cnt_parts.append(jnp.sum(ohf, axis=1, keepdims=True))

    nll = jnp.concatenate(nll_parts, axis=0)           # (rows, 1)
    cnt = jnp.concatenate(cnt_parts, axis=0)           # (rows, 1)

    @pl.when(i == 0)
    def _():
        out_ref[...] = jnp.zeros_like(out_ref)

    out_ref[0:rows, :] += nll
    out_ref[rows:, :] += cnt


@jax.jit
def balanced_bce_loss(output, target):
    """output: [N, C, H, W] float logits; target: [N, H, W] int class ids.

    Class weights are computed from `target` (as the PyTorch __init__ does when the
    module is constructed with the same target tensor used in forward), fused into
    the same kernel pass.
    """
    eps = 1e-6
    n, c, h, w_ = output.shape
    assert c == C
    hw = h * w_

    # Split the pixel axis into n_split segments so the class row-groups fill all 8
    # sublanes (n_split == 8 whenever 8 | HW). Free row-major reshapes only.
    n_split = next(s for s in (8, 4, 2, 1) if hw % s == 0)
    hw_s = hw // n_split
    rows = C * n_split

    logits = output.reshape(n, rows, hw_s)
    tgt = target.astype(jnp.int32).reshape(n, n_split, hw_s)

    # Lane-dense tile: full segment width if it fits, else 32768-lane chunks.
    tile_p = hw_s if hw_s <= MAX_TILE_LANES else MAX_TILE_LANES
    n_tiles = pl.cdiv(hw_s, tile_p)

    kernel = functools.partial(_wce_kernel, hw_s=hw_s, tile_p=tile_p, n_split=n_split)

    acc = pl.pallas_call(
        kernel,
        out_shape=jax.ShapeDtypeStruct((n, 2 * rows, 1), jnp.float32),
        grid_spec=pltpu.PrefetchScalarGridSpec(
            num_scalar_prefetch=0,
            grid=(n, n_tiles),
            in_specs=[
                pl.BlockSpec((None, rows, tile_p), lambda b, i: (b, 0, i)),
                pl.BlockSpec((None, n_split, tile_p), lambda b, i: (b, 0, i)),
            ],
            out_specs=pl.BlockSpec((None, 2 * rows, 1), lambda b, i: (b, 0, 0)),
        ),
        compiler_params=pltpu.CompilerParams(
            dimension_semantics=("parallel", "arbitrary"),
            vmem_limit_bytes=32 * 1024 * 1024,
        ),
    )(logits, tgt)

    # Tiny epilogue: combine per-image per-(class, segment) partials and form the
    # weighted mean (PyTorch CrossEntropyLoss default reduction with weights).
    per = jnp.sum(acc[:, :, 0], axis=0)                       # (2*rows,)
    nll_c = per[:rows].reshape(C, n_split).sum(axis=1)        # per-class NLL sums
    cnt_c = per[rows:].reshape(C, n_split).sum(axis=1)        # per-class pixel counts
    weight = 1.0 / (cnt_c + eps)                              # mirrors __init__
    return jnp.sum(weight * nll_c) / jnp.sum(weight * cnt_c)


def _reference_loss(output, target):
    eps = 1e-6
    n, c, h, w_ = output.shape
    tgt = target.astype(jnp.int32).reshape(-1)
    counts = jnp.stack(
        [jnp.sum((tgt == cls).astype(jnp.float32)) for cls in range(c)]
    )
    weight = 1.0 / (counts + eps)
    logits = jnp.transpose(output, (0, 2, 3, 1)).reshape(-1, c).astype(jnp.float32)
    logz = jax.nn.logsumexp(logits, axis=-1)
    picked = jnp.take_along_axis(logits, tgt[:, None], axis=-1)[:, 0]
    w_pix = weight[tgt]
    return jnp.sum(w_pix * (logz - picked)) / jnp.sum(w_pix)


if __name__ == "__main__":
    key = jax.random.PRNGKey(0)
    k1, k2 = jax.random.split(key)

    N, H, W = 2, 16, 16
    output = jax.random.normal(k1, (N, C, H, W), dtype=jnp.float32)
    target = jax.random.randint(k2, (N, H, W), 0, C, dtype=jnp.int32)

    loss = balanced_bce_loss(output, target)
    jax.block_until_ready(loss)

    ref = _reference_loss(output, target)
    assert jnp.allclose(loss, ref, rtol=1e-5, atol=1e-5), (loss, ref)

    print("KERNEL_OK")
</pallas_src>

<mosaic_0001>
module attributes {stable_mosaic.version = 11 : i64} {
  func.func @_wce_kernel(%arg0: i32, %arg1: i32, %arg2: memref<1x32x32xf32, #tpu.memory_space<vmem>>, %arg3: memref<1x8x32xi32, #tpu.memory_space<vmem>>, %arg4: memref<1x64x1xf32, #tpu.memory_space<vmem>>) attributes {dimension_semantics = [#tpu.dimension_semantics<parallel>, #tpu.dimension_semantics<arbitrary>], iteration_bounds = array<i64: 2, 1>, scalar_prefetch = 0 : i64, scratch_operands = 0 : i64, tpu.core_type = #tpu.core_type<tc>, window_params = [{transform_indices = @transform_0, window_bounds = array<i64: 1, 32, 32>}, {transform_indices = @transform_1, window_bounds = array<i64: 1, 8, 32>}, {transform_indices = @transform_2, window_bounds = array<i64: 1, 64, 1>}]} {
    %c0 = arith.constant 0 : index
    %c0_0 = arith.constant 0 : index
    %c0_1 = arith.constant 0 : index
    %0 = vector.load %arg2[%c0, %c0_0, %c0_1] : memref<1x32x32xf32, #tpu.memory_space<vmem>>, vector<1x32x32xf32>
    %1 = vector.shape_cast %0 : vector<1x32x32xf32> to vector<32x32xf32>
    %c0_2 = arith.constant 0 : index
    %c0_3 = arith.constant 0 : index
    %c0_4 = arith.constant 0 : index
    %2 = vector.load %arg3[%c0_2, %c0_3, %c0_4] : memref<1x8x32xi32, #tpu.memory_space<vmem>>, vector<1x8x32xi32>
    %3 = vector.shape_cast %2 : vector<1x8x32xi32> to vector<8x32xi32>
    %4 = vector.extract_strided_slice %1 {offsets = [0, 0], sizes = [8, 32], strides = [1, 1]} : vector<32x32xf32> to vector<8x32xf32>
    %5 = vector.extract_strided_slice %1 {offsets = [8, 0], sizes = [8, 32], strides = [1, 1]} : vector<32x32xf32> to vector<8x32xf32>
    %6 = vector.extract_strided_slice %1 {offsets = [16, 0], sizes = [8, 32], strides = [1, 1]} : vector<32x32xf32> to vector<8x32xf32>
    %7 = vector.extract_strided_slice %1 {offsets = [24, 0], sizes = [8, 32], strides = [1, 1]} : vector<32x32xf32> to vector<8x32xf32>
    %8 = arith.maximumf %4, %5 : vector<8x32xf32>
    %9 = arith.maximumf %6, %7 : vector<8x32xf32>
    %10 = arith.maximumf %8, %9 : vector<8x32xf32>
    %11 = arith.subf %4, %10 : vector<8x32xf32>
    %12 = math.exp %11 : vector<8x32xf32>
    %13 = arith.subf %5, %10 : vector<8x32xf32>
    %14 = math.exp %13 : vector<8x32xf32>
    %15 = arith.subf %6, %10 : vector<8x32xf32>
    %16 = math.exp %15 : vector<8x32xf32>
    %17 = arith.subf %7, %10 : vector<8x32xf32>
    %18 = math.exp %17 : vector<8x32xf32>
    %19 = arith.addf %12, %14 : vector<8x32xf32>
    %20 = arith.addf %16, %18 : vector<8x32xf32>
    %21 = arith.addf %19, %20 : vector<8x32xf32>
    %22 = math.log %21 : vector<8x32xf32>
    %23 = arith.addf %10, %22 : vector<8x32xf32>
    %c0_i32 = arith.constant 0 : i32
    %24 = vector.broadcast %c0_i32 : i32 to vector<8x32xi32>
    %25 = arith.cmpi eq, %3, %24 : vector<8x32xi32>
    %26 = arith.extui %25 : vector<8x32xi1> to vector<8x32xi32>
    %27 = arith.sitofp %26 : vector<8x32xi32> to vector<8x32xf32>
    %28 = arith.subf %23, %4 : vector<8x32xf32>
    %29 = arith.mulf %27, %28 : vector<8x32xf32>
    %cst = arith.constant dense<0.000000e+00> : vector<8xf32>
    %30 = vector.multi_reduction <add>, %29, %cst [1] : vector<8x32xf32> to vector<8xf32>
    %31 = vector.shape_cast %30 : vector<8xf32> to vector<8x1xf32>
    %cst_5 = arith.constant dense<0.000000e+00> : vector<8xf32>
    %32 = vector.multi_reduction <add>, %27, %cst_5 [1] : vector<8x32xf32> to vector<8xf32>
    %33 = vector.shape_cast %32 : vector<8xf32> to vector<8x1xf32>
    %c1_i32 = arith.constant 1 : i32
    %34 = vector.broadcast %c1_i32 : i32 to vector<8x32xi32>
    %35 = arith.cmpi eq, %3, %34 : vector<8x32xi32>
    %36 = arith.extui %35 : vector<8x32xi1> to vector<8x32xi32>
    %37 = arith.sitofp %36 : vector<8x32xi32> to vector<8x32xf32>
    %38 = arith.subf %23, %5 : vector<8x32xf32>
    %39 = arith.mulf %37, %38 : vector<8x32xf32>
    %cst_6 = arith.constant dense<0.000000e+00> : vector<8xf32>
    %40 = vector.multi_reduction <add>, %39, %cst_6 [1] : vector<8x32xf32> to vector<8xf32>
    %41 = vector.shape_cast %40 : vector<8xf32> to vector<8x1xf32>
    %cst_7 = arith.constant dense<0.000000e+00> : vector<8xf32>
    %42 = vector.multi_reduction <add>, %37, %cst_7 [1] : vector<8x32xf32> to vector<8xf32>
    %43 = vector.shape_cast %42 : vector<8xf32> to vector<8x1xf32>
    %c2_i32 = arith.constant 2 : i32
    %44 = vector.broadcast %c2_i32 : i32 to vector<8x32xi32>
    %45 = arith.cmpi eq, %3, %44 : vector<8x32xi32>
    %46 = arith.extui %45 : vector<8x32xi1> to vector<8x32xi32>
    %47 = arith.sitofp %46 : vector<8x32xi32> to vector<8x32xf32>
    %48 = arith.subf %23, %6 : vector<8x32xf32>
    %49 = arith.mulf %47, %48 : vector<8x32xf32>
    %cst_8 = arith.constant dense<0.000000e+00> : vector<8xf32>
    %50 = vector.multi_reduction <add>, %49, %cst_8 [1] : vector<8x32xf32> to vector<8xf32>
    %51 = vector.shape_cast %50 : vector<8xf32> to vector<8x1xf32>
    %cst_9 = arith.constant dense<0.000000e+00> : vector<8xf32>
    %52 = vector.multi_reduction <add>, %47, %cst_9 [1] : vector<8x32xf32> to vector<8xf32>
    %53 = vector.shape_cast %52 : vector<8xf32> to vector<8x1xf32>
    %c3_i32 = arith.constant 3 : i32
    %54 = vector.broadcast %c3_i32 : i32 to vector<8x32xi32>
    %55 = arith.cmpi eq, %3, %54 : vector<8x32xi32>
    %56 = arith.extui %55 : vector<8x32xi1> to vector<8x32xi32>
    %57 = arith.sitofp %56 : vector<8x32xi32> to vector<8x32xf32>
    %58 = arith.subf %23, %7 : vector<8x32xf32>
    %59 = arith.mulf %57, %58 : vector<8x32xf32>
    %cst_10 = arith.constant dense<0.000000e+00> : vector<8xf32>
    %60 = vector.multi_reduction <add>, %59, %cst_10 [1] : vector<8x32xf32> to vector<8xf32>
    %61 = vector.shape_cast %60 : vector<8xf32> to vector<8x1xf32>
    %cst_11 = arith.constant dense<0.000000e+00> : vector<8xf32>
    %62 = vector.multi_reduction <add>, %57, %cst_11 [1] : vector<8x32xf32> to vector<8xf32>
    %63 = vector.shape_cast %62 : vector<8xf32> to vector<8x1xf32>
    %64 = tpu.concatenate %31, %41, %51, %61 in 0 : vector<8x1xf32>, vector<8x1xf32>, vector<8x1xf32>, vector<8x1xf32> -> vector<32x1xf32>
    %65 = tpu.concatenate %33, %43, %53, %63 in 0 : vector<8x1xf32>, vector<8x1xf32>, vector<8x1xf32>, vector<8x1xf32> -> vector<32x1xf32>
    %c0_i32_12 = arith.constant 0 : i32
    %66 = arith.cmpi eq, %arg1, %c0_i32_12 : i32
    %67 = arith.extui %66 : i1 to i32
    %c0_i32_13 = arith.constant 0 : i32
    %68 = arith.cmpi ne, %67, %c0_i32_13 : i32
    scf.if %68 {
      %cst_25 = arith.constant 0.000000e+00 : f32
      %81 = vector.broadcast %cst_25 : f32 to vector<64x1xf32>
      %c0_26 = arith.constant 0 : index
      %c0_27 = arith.constant 0 : index
      %c0_28 = arith.constant 0 : index
      %82 = vector.load %arg4[%c0_26, %c0_27, %c0_28] : memref<1x64x1xf32, #tpu.memory_space<vmem>>, vector<1x64x1xf32>
      %83 = vector.shape_cast %82 : vector<1x64x1xf32> to vector<64x1xf32>
      %84 = vector.shape_cast %81 : vector<64x1xf32> to vector<1x64x1xf32>
      tpu.vector_store %arg4[%c0_26, %c0_27, %c0_28], %84 {strides = array<i32>} : memref<1x64x1xf32, #tpu.memory_space<vmem>>, vector<1x64x1xf32>,
    } else {
    }
    %c0_14 = arith.constant 0 : index
    %c0_15 = arith.constant 0 : index
    %c0_16 = arith.constant 0 : index
    %69 = vector.load %arg4[%c0_14, %c0_15, %c0_16] : memref<1x64x1xf32, #tpu.memory_space<vmem>>, vector<1x32x1xf32>
    %70 = vector.shape_cast %69 : vector<1x32x1xf32> to vector<32x1xf32>
    %71 = arith.addf %70, %64 : vector<32x1xf32>
    %c0_17 = arith.constant 0 : index
    %c0_18 = arith.constant 0 : index
    %c0_19 = arith.constant 0 : index
    %72 = vector.load %arg4[%c0_17, %c0_18, %c0_19] : memref<1x64x1xf32, #tpu.memory_space<vmem>>, vector<1x32x1xf32>
    %73 = vector.shape_cast %72 : vector<1x32x1xf32> to vector<32x1xf32>
    %74 = vector.shape_cast %71 : vector<32x1xf32> to vector<1x32x1xf32>
    tpu.vector_store %arg4[%c0_17, %c0_18, %c0_19], %74 {strides = array<i32>} : memref<1x64x1xf32, #tpu.memory_space<vmem>>, vector<1x32x1xf32>,
    %c0_20 = arith.constant 0 : index
    %c32 = arith.constant 32 : index
    %c0_21 = arith.constant 0 : index
    %75 = vector.load %arg4[%c0_20, %c32, %c0_21] : memref<1x64x1xf32, #tpu.memory_space<vmem>>, vector<1x32x1xf32>
    %76 = vector.shape_cast %75 : vector<1x32x1xf32> to vector<32x1xf32>
    %77 = arith.addf %76, %65 : vector<32x1xf32>
    %c0_22 = arith.constant 0 : index
    %c32_23 = arith.constant 32 : index
    %c0_24 = arith.constant 0 : index
    %78 = vector.load %arg4[%c0_22, %c32_23, %c0_24] : memref<1x64x1xf32, #tpu.memory_space<vmem>>, vector<1x32x1xf32>
    %79 = vector.shape_cast %78 : vector<1x32x1xf32> to vector<32x1xf32>
    %80 = vector.shape_cast %77 : vector<32x1xf32> to vector<1x32x1xf32>
    tpu.vector_store %arg4[%c0_22, %c32_23, %c0_24], %80 {strides = array<i32>} : memref<1x64x1xf32, #tpu.memory_space<vmem>>, vector<1x32x1xf32>,
    return
  }
  func.func @transform_0(%arg0: i32, %arg1: i32) -> (i32, i32, i32) {
    %c0_i32 = arith.constant 0 : i32
    %c0_i32_0 = arith.constant 0 : i32
    return %arg0, %c0_i32, %arg1 : i32, i32, i32
  }
  func.func @transform_1(%arg0: i32, %arg1: i32) -> (i32, i32, i32) {
    %c0_i32 = arith.constant 0 : i32
    %c0_i32_0 = arith.constant 0 : i32
    return %arg0, %c0_i32, %arg1 : i32, i32, i32
  }
  func.func @transform_2(%arg0: i32, %arg1: i32) -> (i32, i32, i32) {
    %c0_i32 = arith.constant 0 : i32
    %c0_i32_0 = arith.constant 0 : i32
    %c0_i32_1 = arith.constant 0 : i32
    return %arg0, %c0_i32, %c0_i32_0 : i32, i32, i32
  }
}

</mosaic_0001>

<llo_original>
// kernel: balanced_bce_loss.1
$region0: #{balanced_bce_loss.1}
  #allocation0 [shape = 'u32[]', space=smem, size = 0x4, offset = 0x4, fixed_abs, tag = 'smem constant byte address 0x4 - core index']
  #allocation1 [shape = 'u32[144,128]{1,0:T(1,128)}', space=vmem, size = 0x12000, scoped, tag = 'internal scratch']
  %s0 = inlined_call_operand.vmem [shape: f32[2,32,32], index: 0, kind: input, shape index: {}]
  %s1 = inlined_call_operand.vmem [shape: s32[2,8,32], index: 1, kind: input, shape index: {}]
  %s2 = inlined_call_operand.vmem [shape: f32[2,64,1], index: 2, kind: output, shape index: {}]
  %s3 = sld [smem:[#allocation0]]
  $region45: #{balanced_bce_loss.1} parent=0
    _
  %s5 = ssub.s32 1, %s3
  %s6 = scalar_select 0, %s5, %s3
  loop: start=0, step=1, limit=4
  $region2: #{balanced_bce_loss.1} parent=0 // loop_pre_header
    _
  $region3: #{balanced_bce_loss.1} parent=0 // loop_header
    %s8 = sphi 0, %s12
    %p9 = scmp.ge.s32.totalorder %s8, 4
    %s15 = sphi 0, %s27
    %s16 = sphi 0, %s23
    %s17 = sphi 0, %s15
    %s18 = sphi 0, %s16
    %s19 = sphi 0, %s17
    %s20 = sphi 0, %s18
    %s32 = sphi 0, %s34
    %s35 = sphi 0, %s32
    %s36 = sphi 0, %s35
    %s52 = sphi 0, %s36
    %s60 = sphi 0, %s62
    %s63 = sphi 0, %s60
    %s64 = sphi 0, %s63
    %s80 = sphi 0, %s64
    %s86 = sphi 0, %s88
    %s89 = sphi 0, %s86
    %s90 = sphi 0, %s89
    %s106 = sphi 0, %s90
  $region4: #{balanced_bce_loss.1} parent=0 // loop_header_branch
    %11 = sbr.rel (%p9) target = $region8
  $region5: #{balanced_bce_loss.1} parent=0 // loop_body
    %s13 = ssub.s32 %s8, 1
    %s14 = ssub.s32 %s8, 2
    %s21 = sadd.s32 1, %s16
    %p22 = scmp.ge.s32.totalorder %s21, 1
    %s23 = scalar_select %p22, 0, %s21
    %s24 = sadd.s32 1, %s15
    %s25 = scalar_select %p22, %s24, %s15
    %p26 = scmp.ge.s32.totalorder %s25, 2
    %s27 = scalar_select %p26, 0, %s25
    %s28 = ssub.s32 %s15, %s27
    %s29 = ssub.s32 %s16, %s23
    %s30 = sor.u32 %s28, %s29
    %p31 = scmp.eq.s32.totalorder %s30, 0
    %s33 = sadd.s32 %s32, 1
    %s34 = scalar_select %p31, %s32, %s33
    %p37 = pneg %p31
    %p38 = scmp.eq.s32.totalorder %s8, 1
    %p39 = por %p37, %p38
    %p40 = scmp.ne.s32.totalorder %s32, %s35
    %p41 = scmp.eq.s32.totalorder %s8, 0
    %p42 = por %p40, %p41
    %p43 = scmp.ne.s32.totalorder %s32, %s35
    %p44 = scmp.eq.s32.totalorder %s13, 1
    %p45 = por %p43, %p44
    %p46 = scmp.ne.s32.totalorder %s35, %s36
    %p47 = scmp.eq.s32.totalorder %s13, 0
    %p48 = por %p46, %p47
    %p49 = scmp.ne.s32.totalorder %s35, %s36
    %p50 = scmp.eq.s32.totalorder %s14, 1
    %p51 = por %p49, %p50
    %p53 = scmp.ne.s32.totalorder %s36, %s52
    %p54 = scmp.eq.s32.totalorder %s14, 0
    %p55 = por %p53, %p54
    %s56 = ssub.s32 %s15, %s27
    %s57 = ssub.s32 %s16, %s23
    %s58 = sor.u32 %s56, %s57
    %p59 = scmp.eq.s32.totalorder %s58, 0
    %s61 = sadd.s32 %s60, 1
    %s62 = scalar_select %p59, %s60, %s61
    %p65 = pneg %p59
    %p66 = scmp.eq.s32.totalorder %s8, 1
    %p67 = por %p65, %p66
    %p68 = scmp.ne.s32.totalorder %s60, %s63
    %p69 = scmp.eq.s32.totalorder %s8, 0
    %p70 = por %p68, %p69
    %p71 = scmp.ne.s32.totalorder %s60, %s63
    %p72 = scmp.eq.s32.totalorder %s13, 1
    %p73 = por %p71, %p72
    %p74 = scmp.ne.s32.totalorder %s63, %s64
    %p75 = scmp.eq.s32.totalorder %s13, 0
    %p76 = por %p74, %p75
    %p77 = scmp.ne.s32.totalorder %s63, %s64
    %p78 = scmp.eq.s32.totalorder %s14, 1
    %p79 = por %p77, %p78
    %p81 = scmp.ne.s32.totalorder %s64, %s80
    %p82 = scmp.eq.s32.totalorder %s14, 0
    %p83 = por %p81, %p82
    %s84 = ssub.s32 %s15, %s27
    %p85 = scmp.eq.s32.totalorder %s84, 0
    %s87 = sadd.s32 %s86, 1
    %s88 = scalar_select %p85, %s86, %s87
    %p91 = pneg %p85
    %p92 = scmp.eq.s32.totalorder %s8, 1
    %p93 = por %p91, %p92
    %p94 = scmp.ne.s32.totalorder %s86, %s89
    %p95 = scmp.eq.s32.totalorder %s8, 0
    %p96 = por %p94, %p95
    %p97 = scmp.ne.s32.totalorder %s86, %s89
    %p98 = scmp.eq.s32.totalorder %s13, 1
    %p99 = por %p97, %p98
    %p100 = scmp.ne.s32.totalorder %s89, %s90
    %p101 = scmp.eq.s32.totalorder %s13, 0
    %p102 = por %p100, %p101
    %p103 = scmp.ne.s32.totalorder %s89, %s90
    %p104 = scmp.eq.s32.totalorder %s14, 1
    %p105 = por %p103, %p104
    %p107 = scmp.ne.s32.totalorder %s90, %s106
    %p108 = scmp.eq.s32.totalorder %s14, 0
    %p109 = por %p107, %p108
    %p110 = scmp.le.s32.totalorder 1, %s8
    %p111 = scmp.lt.s32.totalorder %s8, 3
    %p112 = pnand %p110, %p111
    %p113 = pneg %p112
    // Predicated region
    $region9: #{balanced_bce_loss.1} parent=5 // pred_check
      _
    $region10: #{balanced_bce_loss.1} parent=5 // pred_check_branch
      %115 = sbr.rel (%p112) target = $region12
    $region11: #{balanced_bce_loss.1} parent=5 // pred_region
      %s116 = ssub.s32 %s8, 1
    $region12: #{balanced_bce_loss.1} parent=5 // pred_fallthru
      _
    %p117 = scmp.lt.s32.totalorder %s8, 2
    // Predicated region
    $region13: #{balanced_bce_loss.1} parent=5 // pred_check
      %p118 = pneg %p117
    $region14: #{balanced_bce_loss.1} parent=5 // pred_check_branch
      %120 = sbr.rel (%p118) target = $region16
    $region15: #{balanced_bce_loss.1} parent=5 // pred_region
      // Predicated region
      $region17: #{balanced_bce_loss.1} parent=15 // pred_check
        %p121 = pneg %p42
      $region18: #{balanced_bce_loss.1} parent=15 // pred_check_branch
        %123 = sbr.rel (%p121) target = $region20
      $region19: #{balanced_bce_loss.1} parent=15 // pred_region
        %p124 = scmp.lt.s32.totalorder %s15, 1
        %s125 = scalar_select %p124, %s15, 1
        %p126 = scmp.lt.s32.totalorder %s16, 0
        %s127 = scalar_select %p126, %s16, 0
        %s128 = smul.addr %s125, 4
        %s129 = sadd.s32 %s127, %s128
        %s130 = smul.addr %s129, 8
        %s131 = scalar_lea.vmem %s0, %s130
      $region20: #{balanced_bce_loss.1} parent=15 // pred_fallthru
        _
      // Predicated region
      $region21: #{balanced_bce_loss.1} parent=15 // pred_check
        %p132 = pneg %p70
      $region22: #{balanced_bce_loss.1} parent=15 // pred_check_branch
        %134 = sbr.rel (%p132) target = $region24
      $region23: #{balanced_bce_loss.1} parent=15 // pred_region
        %p135 = scmp.lt.s32.totalorder %s15, 1
        %s136 = scalar_select %p135, %s15, 1
        %p137 = scmp.lt.s32.totalorder %s16, 0
        %s138 = scalar_select %p137, %s16, 0
        %s139 = sadd.s32 %s138, %s136
        %s140 = smul.addr %s139, 8
        %s141 = scalar_lea.vmem %s1, %s140
      $region24: #{balanced_bce_loss.1} parent=15 // pred_fallthru
        _
    $region16: #{balanced_bce_loss.1} parent=5 // pred_fallthru
      _
    %p142 = scmp.le.s32.totalorder 1, %s8
    %p143 = scmp.lt.s32.totalorder %s8, 3
    %p144 = pnand %p142, %p143
    %p145 = pneg %p144
    // Predicated region
    $region25: #{balanced_bce_loss.1} parent=5 // pred_check
      _
    $region26: #{balanced_bce_loss.1} parent=5 // pred_check_branch
      %147 = sbr.rel (%p144) target = $region28
    $region27: #{balanced_bce_loss.1} parent=5 // pred_region
      %s148 = ssub.s32 %s8, 1
      %p149 = scmp.lt.s32.totalorder %s17, 1
      %s150 = scalar_select %p149, %s17, 1
      %p151 = scmp.lt.s32.totalorder %s18, 0
      %s152 = scalar_select %p151, %s18, 0
      %s153 = smul.addr %s150, 4
      %s154 = sadd.s32 %s152, %s153
      %s155 = smul.addr %s154, 8
      %s156 = scalar_lea.vmem %s0, %s155
      %p157 = pneg %p48
      %p158 = pneg %p45
      %p159 = scmp.lt.s32.totalorder %s17, 1
      %s160 = scalar_select %p159, %s17, 1
      %p161 = scmp.lt.s32.totalorder %s18, 0
      %s162 = scalar_select %p161, %s18, 0
      %s163 = sadd.s32 %s162, %s160
      %s164 = smul.addr %s163, 8
      %s165 = scalar_lea.vmem %s1, %s164
      %p166 = pneg %p76
      %p167 = pneg %p73
      %p168 = pneg %p102
      %p169 = pneg %p99
      %p170 = scmp.lt.s32.totalorder %s17, 1
      %s171 = scalar_select %p170, %s17, 1
      %s172 = smul.addr %s171, 8
      %s173 = smul.addr %s172, 8
      %s174 = scalar_lea.vmem %s2, %s173
      %p175 = scmp.lt.s32.totalorder %s17, 1
      %s176 = scalar_select %p175, %s17, 1
      %p177 = scmp.lt.s32.totalorder %s18, 0
      %s178 = scalar_select %p177, %s18, 0
      %s179 = smul.addr %s176, 4
      %s180 = sadd.s32 %s178, %s179
      %s181 = smul.addr %s180, 8
      %s182 = scalar_lea.vmem %s0, %s181
      %p183 = scmp.lt.s32.totalorder %s17, 1
      %s184 = scalar_select %p183, %s17, 1
      %p185 = scmp.lt.s32.totalorder %s18, 0
      %s186 = scalar_select %p185, %s18, 0
      %s187 = sadd.s32 %s186, %s184
      %s188 = smul.addr %s187, 8
      %s189 = scalar_lea.vmem %s1, %s188
      %p190 = scmp.lt.s32.totalorder %s17, 1
      %s191 = scalar_select %p190, %s17, 1
      %s192 = smul.addr %s191, 8
      %s193 = smul.addr %s192, 8
      %s194 = scalar_lea.vmem %s2, %s193
      %v195 = vld [vmem:[%s182] sm:$0xff]
      %v196 = vld [vmem:[%s182 + $0x8] sm:$0xff]
      %v197 = vld [vmem:[%s182 + $0x10] sm:$0xff]
      %v198 = vld [vmem:[%s182 + $0x18] sm:$0xff]
      %v199 = vld [vmem:[%s189] sm:$0xff]
      %v200 = vmax.f32 %v195, %v196
      %v201 = vmax.f32 %v197, %v198
      %v202 = vmax.f32 %v200, %v201
      %v203 = vsub.f32 %v195, %v202
      %v204 = vmul.f32 %v203, 1.442695
      %v205 = vpow.pop %v204
      %v206 = vsub.f32 %v196, %v202
      %v207 = vmul.f32 %v206, 1.442695
      %v208 = vpow.pop %v207
      %v209 = vsub.f32 %v197, %v202
      %v210 = vmul.f32 %v209, 1.442695
      %v211 = vpow.pop %v210
      %v212 = vsub.f32 %v198, %v202
      %v213 = vmul.f32 %v212, 1.442695
      %v214 = vpow.pop %v213
      %v215 = vadd.f32 %v205, %v208
      %v216 = vadd.f32 %v211, %v214
      %v217 = vadd.f32 %v215, %v216
      %v218 = vlog2.pop %v217
      %v219 = vmul.f32 %v218, 0.6931472
      %v220 = vadd.f32 %v202, %v219
      %vm221 = vcmp.eq.s32.totalorder %v199, 0
      %v222 = vsel %vm221, 1, 0
      %v223 = vcvt.s32.f32 %v222
      %v224 = vsub.f32 %v220, %v195
      %v225 = vmul.f32 %v223, %v224
      %vm226 = vcmask 261120
      %v227 = vsel %vm226, %v225, 0.0
      %228 = vadd.xlane.f32.xlu0 %v227
      %v229 = vpop.xlane.xlu0 %228
      %v230 = vsel %vm226, %v223, 0.0
      %231 = vadd.xlane.f32.xlu0 %v230
      %v232 = vpop.xlane.xlu0 %231
      %vm233 = vcmp.eq.s32.totalorder %v199, 1
      %v234 = vsel %vm233, 1, 0
      %v235 = vcvt.s32.f32 %v234
      %v236 = vsub.f32 %v220, %v196
      %v237 = vmul.f32 %v235, %v236
      %v238 = vsel %vm226, %v237, 0.0
      %239 = vadd.xlane.f32.xlu0 %v238
      %v240 = vpop.xlane.xlu0 %239
      %v241 = vsel %vm226, %v235, 0.0
      %242 = vadd.xlane.f32.xlu0 %v241
      %v243 = vpop.xlane.xlu0 %242
      %vm244 = vcmp.eq.s32.totalorder %v199, 2
      %v245 = vsel %vm244, 1, 0
      %v246 = vcvt.s32.f32 %v245
      %v247 = vsub.f32 %v220, %v197
      %v248 = vmul.f32 %v246, %v247
      %v249 = vsel %vm226, %v248, 0.0
      %250 = vadd.xlane.f32.xlu0 %v249
      %v251 = vpop.xlane.xlu0 %250
      %v252 = vsel %vm226, %v246, 0.0
      %253 = vadd.xlane.f32.xlu0 %v252
      %v254 = vpop.xlane.xlu0 %253
      %vm255 = vcmp.eq.s32.totalorder %v199, 3
      %v256 = vsel %vm255, 1, 0
      %v257 = vcvt.s32.f32 %v256
      %v258 = vsub.f32 %v220, %v198
      %v259 = vmul.f32 %v257, %v258
      %v260 = vsel %vm226, %v259, 0.0
      %261 = vadd.xlane.f32.xlu0 %v260
      %v262 = vpop.xlane.xlu0 %261
      %v263 = vsel %vm226, %v257, 0.0
      %264 = vadd.xlane.f32.xlu0 %v263
      %v265 = vpop.xlane.xlu0 %264
      %p266 = scmp.eq.s32.totalorder %s18, 0
      // Predicated region
      $region29: #{balanced_bce_loss.1} parent=27 // pred_check
        %p267 = pneg %p266
      $region30: #{balanced_bce_loss.1} parent=27 // pred_check_branch
        %269 = sbr.rel (%p267) target = $region32
      $region31: #{balanced_bce_loss.1} parent=27 // pred_region
        %vm270 = vcmask 7168
        %271 = vst.msk [vmem:[%s194] sm:$0xff] %vm270, 0.0
        %272 = vst.msk [vmem:[%s194 + $0x8] sm:$0xff] %vm270, 0.0
        %273 = vst.msk [vmem:[%s194 + $0x10] sm:$0xff] %vm270, 0.0
        %274 = vst.msk [vmem:[%s194 + $0x18] sm:$0xff] %vm270, 0.0
        %275 = vst.msk [vmem:[%s194 + $0x20] sm:$0xff] %vm270, 0.0
        %276 = vst.msk [vmem:[%s194 + $0x28] sm:$0xff] %vm270, 0.0
        %277 = vst.msk [vmem:[%s194 + $0x30] sm:$0xff] %vm270, 0.0
        %278 = vst.msk [vmem:[%s194 + $0x38] sm:$0xff] %vm270, 0.0
      $region32: #{balanced_bce_loss.1} parent=27 // pred_fallthru
        _
      %v279 = vld [vmem:[%s194] sm:$0xff]
      %v280 = vld [vmem:[%s194 + $0x8] sm:$0xff]
      %v281 = vld [vmem:[%s194 + $0x10] sm:$0xff]
      %v282 = vld [vmem:[%s194 + $0x18] sm:$0xff]
      %v283 = vadd.f32 %v279, %v229
      %v284 = vadd.f32 %v280, %v240
      %v285 = vadd.f32 %v281, %v251
      %v286 = vadd.f32 %v282, %v262
      %vm287 = vcmask 7168
      %288 = vst.msk [vmem:[%s194] sm:$0xff] %vm287, %v283
      %289 = vst.msk [vmem:[%s194 + $0x8] sm:$0xff] %vm287, %v284
      %290 = vst.msk [vmem:[%s194 + $0x10] sm:$0xff] %vm287, %v285
      %291 = vst.msk [vmem:[%s194 + $0x18] sm:$0xff] %vm287, %v286
      %v292 = vld [vmem:[%s194 + $0x20] sm:$0xff]
      %v293 = vld [vmem:[%s194 + $0x28] sm:$0xff]
      %v294 = vld [vmem:[%s194 + $0x30] sm:$0xff]
      %v295 = vld [vmem:[%s194 + $0x38] sm:$0xff]
      %v296 = vadd.f32 %v292, %v232
      %v297 = vadd.f32 %v293, %v243
      %v298 = vadd.f32 %v294, %v254
      %v299 = vadd.f32 %v295, %v265
      %300 = vst.msk [vmem:[%s194 + $0x20] sm:$0xff] %vm287, %v296
      %301 = vst.msk [vmem:[%s194 + $0x28] sm:$0xff] %vm287, %v297
      %302 = vst.msk [vmem:[%s194 + $0x30] sm:$0xff] %vm287, %v298
      %303 = vst.msk [vmem:[%s194 + $0x38] sm:$0xff] %vm287, %v299
      %p304 = scmp.lt.s32.totalorder %s17, 1
      %s305 = scalar_select %p304, %s17, 1
      %s306 = smul.addr %s305, 8
      %s307 = smul.addr %s306, 8
      %s308 = scalar_lea.vmem %s2, %s307
      // Predicated region
      $region33: #{balanced_bce_loss.1} parent=27 // pred_check
        %p309 = pneg %p99
      $region34: #{balanced_bce_loss.1} parent=27 // pred_check_branch
        %311 = sbr.rel (%p309) target = $region36
      $region35: #{balanced_bce_loss.1} parent=27 // pred_region
        _
      $region36: #{balanced_bce_loss.1} parent=27 // pred_fallthru
        _
    $region28: #{balanced_bce_loss.1} parent=5 // pred_fallthru
      _
    %p312 = scmp.le.s32.totalorder 2, %s8
    // Predicated region
    $region37: #{balanced_bce_loss.1} parent=5 // pred_check
      %p313 = pneg %p312
    $region38: #{balanced_bce_loss.1} parent=5 // pred_check_branch
      %315 = sbr.rel (%p313) target = $region40
    $region39: #{balanced_bce_loss.1} parent=5 // pred_region
      %s316 = ssub.s32 %s8, 2
      // Predicated region
      $region41: #{balanced_bce_loss.1} parent=39 // pred_check
        %p317 = pneg %p105
      $region42: #{balanced_bce_loss.1} parent=39 // pred_check_branch
        %319 = sbr.rel (%p317) target = $region44
      $region43: #{balanced_bce_loss.1} parent=39 // pred_region
        %p320 = scmp.lt.s32.totalorder %s19, 1
        %s321 = scalar_select %p320, %s19, 1
        %s322 = smul.addr %s321, 8
        %s323 = smul.addr %s322, 8
        %s324 = scalar_lea.vmem %s2, %s323
      $region44: #{balanced_bce_loss.1} parent=39 // pred_fallthru
        _
    $region40: #{balanced_bce_loss.1} parent=5 // pred_fallthru
      _
  $region6: #{balanced_bce_loss.1} parent=0 // loop_footer
    %s12 = sadd.s32 1, %s8
  $region7: #{balanced_bce_loss.1} parent=0 // loop_footer_branch
    %7 = sbr.rel target = $region3
  $region8: #{balanced_bce_loss.1} parent=0 // loop_exit
    _

</llo_original>
